<compile_context>
chip_gen: v5e
topology: v5e:2x2
jax: 0.10.0
libtpu: 0.0.40
codegen_flags: <defaults>
</compile_context>

<pallas_src>
import functools
import math

import numpy as np
import jax
import jax.numpy as jnp
from jax.experimental import pallas as pl
from jax.experimental.pallas import tpu as pltpu


# ----------------------------------------------------------------------------
# Parameter / input construction (glue, matches the PyTorch module's setup)
# ----------------------------------------------------------------------------
def velvet_noise(key, batch, noise_length, pulse_distance):
    """JAX equivalent of FVN.velvet_noise (one random ±1 pulse per pd-chunk)."""
    chunks_per_batch = noise_length // pulse_distance + 1
    kp, kv = jax.random.split(key)
    pos = jax.random.randint(kp, (batch, chunks_per_batch), 0, pulse_distance)
    sign = jax.random.randint(kv, (batch, chunks_per_batch), 0, 2) * 2 - 1
    onehot = (pos[..., None] == jnp.arange(pulse_distance)[None, None, :])
    velvet = onehot.astype(jnp.float32) * sign[..., None].astype(jnp.float32)
    return velvet.reshape(batch, -1)[:, :noise_length]


def schroeder_allpass(num_sap, sap_len):
    """Series Schroeder allpass impulse response (numpy, replaces scipy.signal.lfilter)."""
    As = np.linspace(0.75, 0.95, 20)
    Ns = [23, 48, 79, 109, 113, 127, 163, 191, 229, 251,
          293, 337, 397, 421, 449, 509, 541, 601, 641, 691][:num_sap]
    x = np.zeros(sap_len, dtype=np.float64)
    x[0] = 1.0
    for i, N in enumerate(Ns):
        a = As[i]
        y = np.zeros(sap_len, dtype=np.float64)
        for n in range(sap_len):
            xN = x[n - N] if n >= N else 0.0
            yN = y[n - N] if n >= N else 0.0
            # y[n] = a*x[n] + x[n-N] - a*y[n-N]   (B=[a,0..0,1], A=[1,0..0,a])
            y[n] = a * x[n] + xN - a * yN
        x = y
    return x.astype(np.float32)


def _round_up(x, m):
    return (x + m - 1) // m * m


# ----------------------------------------------------------------------------
# Pallas kernel:
#   gain*velvet (VPU) -> chunked full conv via Toeplitz matmul (MXU, bf16 in /
#   f32 acc) -> overlap-add accumulated directly into o_ref (+ padded FIR).
# Grid: (batch, toeplitz N tile). Output block is resident across the N axis.
# ----------------------------------------------------------------------------
def _fvn_kernel(velvet_ref, gains_ref, toep_ref, fir_ref, o_ref, *,
                m_chunks, chunk, tn, off_align):
    # velvet_ref: (1, S, Lseg) bf16    gains_ref: (1, S, 1) f32
    # toep_ref:   (1, chunk, tn) bf16  (one N-tile of the color Toeplitz band)
    # fir_ref/o_ref: (1, 1, lout_pad) f32
    n = pl.program_id(1)

    @pl.when(n == 0)
    def _init():
        o_ref[...] = fir_ref[...]          # initialise accumulator with padded FIR

    merged = velvet_ref[0] * gains_ref[0]                      # (S, Lseg)  VPU, f32
    if merged.shape != (m_chunks, chunk):                      # re-tile conv chunking
        merged = merged.reshape(m_chunks, chunk)               # (M, chunk), same flat buf
    merged = merged.astype(jnp.bfloat16)

    colored = jnp.dot(merged, toep_ref[0],
                      preferred_element_type=jnp.float32)      # (M, tn)  MXU, f32 acc

    # Overlap-add straight into the output ref: only tn lanes touched per chunk,
    # offsets are multiples of 128 (lane-aligned, unmasked stores).
    for m in range(m_chunks):
        off = m * chunk + n * tn
        if off_align > 1:
            off = pl.multiple_of(off, off_align)
        o_ref[0, :, pl.ds(off, tn)] += colored[m:m + 1, :]


def fvn_forward_pallas(velvet, gains, color, fir, seg_num, ir_length, *,
                       chunk=None, n_tile=2048):
    """velvet (B, ir_length), gains (B, S), color (B, Lc), fir (B, Lfir) -> (B, Lout)."""
    B = gains.shape[0]
    lseg = ir_length // seg_num
    lc = color.shape[-1]
    lout = ir_length + lc - 1

    # Conv re-chunking: overlap-add of per-chunk full convs with a shared kernel
    # equals the full conv of the flat signal, for ANY chunk size.  Default to a
    # lane-aligned chunk of 128 (decoupled from the segment length).
    if chunk is None:
        chunk = 128 if ir_length % 128 == 0 else lseg
    assert ir_length % chunk == 0
    m_chunks = ir_length // chunk

    # Lane-aligned padding of the Toeplitz N dim and of the output.
    tn = _round_up(min(max(n_tile, 128), _round_up(chunk + lc - 1, 128)), 128)
    n_cols_pad = _round_up(chunk + lc - 1, tn)
    n_tiles = n_cols_pad // tn
    lout_pad = (m_chunks - 1) * chunk + n_cols_pad             # >= lout, mult of 128 when chunk is
    off_align = math.gcd(chunk, tn)                            # guaranteed divisor of OLA offsets

    # bf16 matmul inputs (velvet is exactly ±1/0 in bf16), f32 everywhere else.
    velvet_seg = velvet.reshape(B, seg_num, lseg).astype(jnp.bfloat16)
    gains3 = gains.reshape(B, seg_num, 1).astype(jnp.float32)

    # Toeplitz band of the color IR: toep[b, k, t] = color[b, t - k]; padded
    # columns (t - k >= lc) are zero, so OLA writes past lout add zeros.
    t_idx = jnp.arange(n_cols_pad)[None, :] - jnp.arange(chunk)[:, None]
    valid = (t_idx >= 0) & (t_idx < lc)
    toep = jnp.where(valid[None],
                     color[:, jnp.clip(t_idx, 0, lc - 1)],
                     0.0).astype(jnp.bfloat16)                 # (B, chunk, n_cols_pad)

    fir_pad = jnp.pad(fir.astype(jnp.float32),
                      ((0, 0), (0, lout_pad - fir.shape[-1]))).reshape(B, 1, lout_pad)

    kernel = functools.partial(_fvn_kernel, m_chunks=m_chunks, chunk=chunk,
                               tn=tn, off_align=off_align)

    out = pl.pallas_call(
        kernel,
        out_shape=jax.ShapeDtypeStruct((B, 1, lout_pad), jnp.float32),
        grid=(B, n_tiles),
        in_specs=[
            pl.BlockSpec((1, seg_num, lseg), lambda b, n: (b, 0, 0)),      # velvet
            pl.BlockSpec((1, seg_num, 1), lambda b, n: (b, 0, 0)),         # gains
            pl.BlockSpec((1, chunk, tn), lambda b, n: (b, 0, n)),          # toeplitz N-tile
            pl.BlockSpec((1, 1, lout_pad), lambda b, n: (b, 0, 0)),        # padded FIR
        ],
        out_specs=pl.BlockSpec((1, 1, lout_pad), lambda b, n: (b, 0, 0)),  # resident across n
        compiler_params=pltpu.CompilerParams(
            # batch axis independent -> megacore-parallel on v7x; Toeplitz tile
            # axis is an accumulation axis -> arbitrary.
            dimension_semantics=("parallel", "arbitrary"),
            vmem_limit_bytes=64 * 1024 * 1024),
    )(velvet_seg, gains3, toep, fir_pad)
    return out[:, 0, :lout]


# ----------------------------------------------------------------------------
# Pure numpy reference (mirrors the PyTorch forward for the implemented config)
# ----------------------------------------------------------------------------
def reference_fvn(velvet, gains, color, fir, seg_num, ir_length):
    B = gains.shape[0]
    lseg = ir_length // seg_num
    lc = color.shape[-1]
    lout_seg = lseg + lc - 1
    lout = ir_length + lc - 1
    merged = velvet.reshape(B, seg_num, lseg) * gains[:, :, None]
    out = np.zeros((B, lout), dtype=np.float64)
    out[:, :fir.shape[-1]] += fir
    for b in range(B):
        for s in range(seg_num):
            conv = np.convolve(merged[b, s], color[b], mode='full')
            out[b, s * lseg:s * lseg + lout_seg] += conv
    return out.astype(np.float32)


if __name__ == "__main__":
    # Small config consistent with the module's shape relations:
    #   ir_length = seg_num * Lseg, Lseg = ir_length // seg_num
    B = 2
    SEG_NUM = 8
    GAIN_PER_SEG = 2
    IR_LENGTH = 1024
    PULSE_DISTANCE = 8
    NUM_SAP = 4
    SAP_LEN = 256   # TODO(synk): original module hard-codes 9000-tap allpass IRs; shortened for the small demo
    FIR_LEN = 64
    COLOR_BINS = 65  # rfft bins -> irfft length 128

    key = jax.random.PRNGKey(0)
    k_g, k_fir, k_cr, k_ci, k_v = jax.random.split(key, 5)

    # z = {'g': gains, 'fir': fir}, color = rfft spectrum
    gains = jax.random.normal(k_g, (B, SEG_NUM), dtype=jnp.float32)
    fir = jax.random.normal(k_fir, (B, FIR_LEN), dtype=jnp.float32)
    color_spec = (jax.random.normal(k_cr, (B, 1, COLOR_BINS), dtype=jnp.float32)
                  + 1j * jax.random.normal(k_ci, (B, 1, COLOR_BINS), dtype=jnp.float32))

    # Velvet noise (the module regenerates it each forward; here deterministic from PRNGKey(0))
    velvet = velvet_noise(k_v, B, IR_LENGTH, PULSE_DISTANCE)

    # Schroeder allpass IR (cumulative_sap=False -> single IR shared by all segments)
    sap = jnp.asarray(schroeder_allpass(NUM_SAP, SAP_LEN))

    # color = torch.fft.irfft(color); color = dsp.convolve(color, sap.view(1,1,-1))
    color_t = jnp.fft.irfft(color_spec, axis=-1)[:, 0, :]                       # (B, 128)
    color = jax.vmap(lambda c: jnp.convolve(c, sap, mode='full'))(color_t)      # (B, Lc=383)

    # n_tile=256 exercises the Toeplitz N-tiling (2 tiles) at demo sizes.
    out = fvn_forward_pallas(velvet, gains, color, fir, SEG_NUM, IR_LENGTH,
                             n_tile=256)
    out = jax.block_until_ready(out)

    ref = reference_fvn(np.asarray(velvet), np.asarray(gains), np.asarray(color),
                        np.asarray(fir), SEG_NUM, IR_LENGTH)
    assert out.shape == ref.shape, (out.shape, ref.shape)
    # bf16 MXU inputs (f32 accumulation) -> slightly looser tolerance than pure f32.
    np.testing.assert_allclose(np.asarray(out), ref, rtol=1e-2, atol=1e-2)
    print("KERNEL_OK")
</pallas_src>

<mosaic_0001>
module attributes {stable_mosaic.version = 11 : i64} {
  func.func @_fvn_kernel(%arg0: i32, %arg1: i32, %arg2: memref<1x8x128xbf16, #tpu.memory_space<vmem>>, %arg3: memref<1x8x1xf32, #tpu.memory_space<vmem>>, %arg4: memref<1x128x256xbf16, #tpu.memory_space<vmem>>, %arg5: memref<1x1x1408xf32, #tpu.memory_space<vmem>>, %arg6: memref<1x1x1408xf32, #tpu.memory_space<vmem>>) attributes {dimension_semantics = [#tpu.dimension_semantics<parallel>, #tpu.dimension_semantics<arbitrary>], iteration_bounds = array<i64: 2, 2>, scalar_prefetch = 0 : i64, scratch_operands = 0 : i64, tpu.core_type = #tpu.core_type<tc>, window_params = [{transform_indices = @transform_0, window_bounds = array<i64: 1, 8, 128>}, {transform_indices = @transform_1, window_bounds = array<i64: 1, 8, 1>}, {transform_indices = @transform_2, window_bounds = array<i64: 1, 128, 256>}, {transform_indices = @transform_3, window_bounds = array<i64: 1, 1, 1408>}, {transform_indices = @transform_4, window_bounds = array<i64: 1, 1, 1408>}]} {
    %c0_i32 = arith.constant 0 : i32
    %0 = arith.cmpi eq, %arg1, %c0_i32 : i32
    %1 = arith.extui %0 : i1 to i32
    %c0_i32_0 = arith.constant 0 : i32
    %2 = arith.cmpi ne, %1, %c0_i32_0 : i32
    scf.if %2 {
      %c0_50 = arith.constant 0 : index
      %c0_51 = arith.constant 0 : index
      %c0_52 = arith.constant 0 : index
      %110 = vector.load %arg5[%c0_50, %c0_51, %c0_52] : memref<1x1x1408xf32, #tpu.memory_space<vmem>>, vector<1x1x1408xf32>
      %c0_53 = arith.constant 0 : index
      %c0_54 = arith.constant 0 : index
      %c0_55 = arith.constant 0 : index
      %111 = vector.load %arg6[%c0_53, %c0_54, %c0_55] : memref<1x1x1408xf32, #tpu.memory_space<vmem>>, vector<1x1x1408xf32>
      tpu.vector_store %arg6[%c0_53, %c0_54, %c0_55], %110 {strides = array<i32>} : memref<1x1x1408xf32, #tpu.memory_space<vmem>>, vector<1x1x1408xf32>,
    } else {
    }
    %c0 = arith.constant 0 : index
    %c0_1 = arith.constant 0 : index
    %c0_2 = arith.constant 0 : index
    %3 = vector.load %arg2[%c0, %c0_1, %c0_2] : memref<1x8x128xbf16, #tpu.memory_space<vmem>>, vector<1x8x128xbf16>
    %4 = vector.shape_cast %3 : vector<1x8x128xbf16> to vector<8x128xbf16>
    %c0_3 = arith.constant 0 : index
    %c0_4 = arith.constant 0 : index
    %c0_5 = arith.constant 0 : index
    %5 = vector.load %arg3[%c0_3, %c0_4, %c0_5] : memref<1x8x1xf32, #tpu.memory_space<vmem>>, vector<1x8x1xf32>
    %6 = vector.shape_cast %5 : vector<1x8x1xf32> to vector<8x1xf32>
    %7 = arith.extf %4 : vector<8x128xbf16> to vector<8x128xf32>
    %8 = vector.broadcast %6 : vector<8x1xf32> to vector<8x128xf32>
    %9 = arith.mulf %7, %8 : vector<8x128xf32>
    %10 = arith.truncf %9 : vector<8x128xf32> to vector<8x128xbf16>
    %c0_6 = arith.constant 0 : index
    %c0_7 = arith.constant 0 : index
    %c0_8 = arith.constant 0 : index
    %11 = vector.load %arg4[%c0_6, %c0_7, %c0_8] : memref<1x128x256xbf16, #tpu.memory_space<vmem>>, vector<1x128x256xbf16>
    %12 = vector.shape_cast %11 : vector<1x128x256xbf16> to vector<128x256xbf16>
    %cst = arith.constant dense<0.000000e+00> : vector<8x256xf32>
    %13 = tpu.matmul %10, %12, %cst {dimension_numbers = #tpu.dot_dimension_numbers<[1], [0], [0], [1], [0, 0, 1, 1], [], []>} : vector<8x128xbf16>, vector<128x256xbf16>, vector<8x256xf32> -> vector<8x256xf32>
    %c256_i32 = arith.constant 256 : i32
    %14 = arith.muli %arg1, %c256_i32 : i32
    %c0_i32_9 = arith.constant 0 : i32
    %15 = arith.addi %c0_i32_9, %14 : i32
    %16 = tpu.assume_multiple %15, 128 : i32
    %c0_10 = arith.constant 0 : index
    %c0_11 = arith.constant 0 : index
    %17 = arith.index_cast %16 : i32 to index
    %18 = vector.load %arg6[%c0_10, %c0_11, %17] : memref<1x1x1408xf32, #tpu.memory_space<vmem>>, vector<1x1x256xf32>
    %19 = vector.shape_cast %18 : vector<1x1x256xf32> to vector<1x256xf32>
    %20 = vector.extract_strided_slice %13 {offsets = [0, 0], sizes = [1, 256], strides = [1, 1]} : vector<8x256xf32> to vector<1x256xf32>
    %21 = arith.addf %19, %20 : vector<1x256xf32>
    %c0_12 = arith.constant 0 : index
    %c0_13 = arith.constant 0 : index
    %22 = arith.index_cast %16 : i32 to index
    %23 = vector.load %arg6[%c0_12, %c0_13, %22] : memref<1x1x1408xf32, #tpu.memory_space<vmem>>, vector<1x1x256xf32>
    %24 = vector.shape_cast %23 : vector<1x1x256xf32> to vector<1x256xf32>
    %25 = vector.shape_cast %21 : vector<1x256xf32> to vector<1x1x256xf32>
    tpu.vector_store %arg6[%c0_12, %c0_13, %22], %25 {strides = array<i32>} : memref<1x1x1408xf32, #tpu.memory_space<vmem>>, vector<1x1x256xf32>,
    %c256_i32_14 = arith.constant 256 : i32
    %26 = arith.muli %arg1, %c256_i32_14 : i32
    %c128_i32 = arith.constant 128 : i32
    %27 = arith.addi %c128_i32, %26 : i32
    %28 = tpu.assume_multiple %27, 128 : i32
    %c0_15 = arith.constant 0 : index
    %c0_16 = arith.constant 0 : index
    %29 = arith.index_cast %28 : i32 to index
    %30 = vector.load %arg6[%c0_15, %c0_16, %29] : memref<1x1x1408xf32, #tpu.memory_space<vmem>>, vector<1x1x256xf32>
    %31 = vector.shape_cast %30 : vector<1x1x256xf32> to vector<1x256xf32>
    %32 = vector.extract_strided_slice %13 {offsets = [1, 0], sizes = [1, 256], strides = [1, 1]} : vector<8x256xf32> to vector<1x256xf32>
    %33 = arith.addf %31, %32 : vector<1x256xf32>
    %c0_17 = arith.constant 0 : index
    %c0_18 = arith.constant 0 : index
    %34 = arith.index_cast %28 : i32 to index
    %35 = vector.load %arg6[%c0_17, %c0_18, %34] : memref<1x1x1408xf32, #tpu.memory_space<vmem>>, vector<1x1x256xf32>
    %36 = vector.shape_cast %35 : vector<1x1x256xf32> to vector<1x256xf32>
    %37 = vector.shape_cast %33 : vector<1x256xf32> to vector<1x1x256xf32>
    tpu.vector_store %arg6[%c0_17, %c0_18, %34], %37 {strides = array<i32>} : memref<1x1x1408xf32, #tpu.memory_space<vmem>>, vector<1x1x256xf32>,
    %c256_i32_19 = arith.constant 256 : i32
    %38 = arith.muli %arg1, %c256_i32_19 : i32
    %c256_i32_20 = arith.constant 256 : i32
    %39 = arith.addi %c256_i32_20, %38 : i32
    %40 = tpu.assume_multiple %39, 128 : i32
    %c0_21 = arith.constant 0 : index
    %c0_22 = arith.constant 0 : index
    %41 = arith.index_cast %40 : i32 to index
    %42 = vector.load %arg6[%c0_21, %c0_22, %41] : memref<1x1x1408xf32, #tpu.memory_space<vmem>>, vector<1x1x256xf32>
    %43 = vector.shape_cast %42 : vector<1x1x256xf32> to vector<1x256xf32>
    %44 = vector.extract_strided_slice %13 {offsets = [2, 0], sizes = [1, 256], strides = [1, 1]} : vector<8x256xf32> to vector<1x256xf32>
    %45 = arith.addf %43, %44 : vector<1x256xf32>
    %c0_23 = arith.constant 0 : index
    %c0_24 = arith.constant 0 : index
    %46 = arith.index_cast %40 : i32 to index
    %47 = vector.load %arg6[%c0_23, %c0_24, %46] : memref<1x1x1408xf32, #tpu.memory_space<vmem>>, vector<1x1x256xf32>
    %48 = vector.shape_cast %47 : vector<1x1x256xf32> to vector<1x256xf32>
    %49 = vector.shape_cast %45 : vector<1x256xf32> to vector<1x1x256xf32>
    tpu.vector_store %arg6[%c0_23, %c0_24, %46], %49 {strides = array<i32>} : memref<1x1x1408xf32, #tpu.memory_space<vmem>>, vector<1x1x256xf32>,
    %c256_i32_25 = arith.constant 256 : i32
    %50 = arith.muli %arg1, %c256_i32_25 : i32
    %c384_i32 = arith.constant 384 : i32
    %51 = arith.addi %c384_i32, %50 : i32
    %52 = tpu.assume_multiple %51, 128 : i32
    %c0_26 = arith.constant 0 : index
    %c0_27 = arith.constant 0 : index
    %53 = arith.index_cast %52 : i32 to index
    %54 = vector.load %arg6[%c0_26, %c0_27, %53] : memref<1x1x1408xf32, #tpu.memory_space<vmem>>, vector<1x1x256xf32>
    %55 = vector.shape_cast %54 : vector<1x1x256xf32> to vector<1x256xf32>
    %56 = vector.extract_strided_slice %13 {offsets = [3, 0], sizes = [1, 256], strides = [1, 1]} : vector<8x256xf32> to vector<1x256xf32>
    %57 = arith.addf %55, %56 : vector<1x256xf32>
    %c0_28 = arith.constant 0 : index
    %c0_29 = arith.constant 0 : index
    %58 = arith.index_cast %52 : i32 to index
    %59 = vector.load %arg6[%c0_28, %c0_29, %58] : memref<1x1x1408xf32, #tpu.memory_space<vmem>>, vector<1x1x256xf32>
    %60 = vector.shape_cast %59 : vector<1x1x256xf32> to vector<1x256xf32>
    %61 = vector.shape_cast %57 : vector<1x256xf32> to vector<1x1x256xf32>
    tpu.vector_store %arg6[%c0_28, %c0_29, %58], %61 {strides = array<i32>} : memref<1x1x1408xf32, #tpu.memory_space<vmem>>, vector<1x1x256xf32>,
    %c256_i32_30 = arith.constant 256 : i32
    %62 = arith.muli %arg1, %c256_i32_30 : i32
    %c512_i32 = arith.constant 512 : i32
    %63 = arith.addi %c512_i32, %62 : i32
    %64 = tpu.assume_multiple %63, 128 : i32
    %c0_31 = arith.constant 0 : index
    %c0_32 = arith.constant 0 : index
    %65 = arith.index_cast %64 : i32 to index
    %66 = vector.load %arg6[%c0_31, %c0_32, %65] : memref<1x1x1408xf32, #tpu.memory_space<vmem>>, vector<1x1x256xf32>
    %67 = vector.shape_cast %66 : vector<1x1x256xf32> to vector<1x256xf32>
    %68 = vector.extract_strided_slice %13 {offsets = [4, 0], sizes = [1, 256], strides = [1, 1]} : vector<8x256xf32> to vector<1x256xf32>
    %69 = arith.addf %67, %68 : vector<1x256xf32>
    %c0_33 = arith.constant 0 : index
    %c0_34 = arith.constant 0 : index
    %70 = arith.index_cast %64 : i32 to index
    %71 = vector.load %arg6[%c0_33, %c0_34, %70] : memref<1x1x1408xf32, #tpu.memory_space<vmem>>, vector<1x1x256xf32>
    %72 = vector.shape_cast %71 : vector<1x1x256xf32> to vector<1x256xf32>
    %73 = vector.shape_cast %69 : vector<1x256xf32> to vector<1x1x256xf32>
    tpu.vector_store %arg6[%c0_33, %c0_34, %70], %73 {strides = array<i32>} : memref<1x1x1408xf32, #tpu.memory_space<vmem>>, vector<1x1x256xf32>,
    %c256_i32_35 = arith.constant 256 : i32
    %74 = arith.muli %arg1, %c256_i32_35 : i32
    %c640_i32 = arith.constant 640 : i32
    %75 = arith.addi %c640_i32, %74 : i32
    %76 = tpu.assume_multiple %75, 128 : i32
    %c0_36 = arith.constant 0 : index
    %c0_37 = arith.constant 0 : index
    %77 = arith.index_cast %76 : i32 to index
    %78 = vector.load %arg6[%c0_36, %c0_37, %77] : memref<1x1x1408xf32, #tpu.memory_space<vmem>>, vector<1x1x256xf32>
    %79 = vector.shape_cast %78 : vector<1x1x256xf32> to vector<1x256xf32>
    %80 = vector.extract_strided_slice %13 {offsets = [5, 0], sizes = [1, 256], strides = [1, 1]} : vector<8x256xf32> to vector<1x256xf32>
    %81 = arith.addf %79, %80 : vector<1x256xf32>
    %c0_38 = arith.constant 0 : index
    %c0_39 = arith.constant 0 : index
    %82 = arith.index_cast %76 : i32 to index
    %83 = vector.load %arg6[%c0_38, %c0_39, %82] : memref<1x1x1408xf32, #tpu.memory_space<vmem>>, vector<1x1x256xf32>
    %84 = vector.shape_cast %83 : vector<1x1x256xf32> to vector<1x256xf32>
    %85 = vector.shape_cast %81 : vector<1x256xf32> to vector<1x1x256xf32>
    tpu.vector_store %arg6[%c0_38, %c0_39, %82], %85 {strides = array<i32>} : memref<1x1x1408xf32, #tpu.memory_space<vmem>>, vector<1x1x256xf32>,
    %c256_i32_40 = arith.constant 256 : i32
    %86 = arith.muli %arg1, %c256_i32_40 : i32
    %c768_i32 = arith.constant 768 : i32
    %87 = arith.addi %c768_i32, %86 : i32
    %88 = tpu.assume_multiple %87, 128 : i32
    %c0_41 = arith.constant 0 : index
    %c0_42 = arith.constant 0 : index
    %89 = arith.index_cast %88 : i32 to index
    %90 = vector.load %arg6[%c0_41, %c0_42, %89] : memref<1x1x1408xf32, #tpu.memory_space<vmem>>, vector<1x1x256xf32>
    %91 = vector.shape_cast %90 : vector<1x1x256xf32> to vector<1x256xf32>
    %92 = vector.extract_strided_slice %13 {offsets = [6, 0], sizes = [1, 256], strides = [1, 1]} : vector<8x256xf32> to vector<1x256xf32>
    %93 = arith.addf %91, %92 : vector<1x256xf32>
    %c0_43 = arith.constant 0 : index
    %c0_44 = arith.constant 0 : index
    %94 = arith.index_cast %88 : i32 to index
    %95 = vector.load %arg6[%c0_43, %c0_44, %94] : memref<1x1x1408xf32, #tpu.memory_space<vmem>>, vector<1x1x256xf32>
    %96 = vector.shape_cast %95 : vector<1x1x256xf32> to vector<1x256xf32>
    %97 = vector.shape_cast %93 : vector<1x256xf32> to vector<1x1x256xf32>
    tpu.vector_store %arg6[%c0_43, %c0_44, %94], %97 {strides = array<i32>} : memref<1x1x1408xf32, #tpu.memory_space<vmem>>, vector<1x1x256xf32>,
    %c256_i32_45 = arith.constant 256 : i32
    %98 = arith.muli %arg1, %c256_i32_45 : i32
    %c896_i32 = arith.constant 896 : i32
    %99 = arith.addi %c896_i32, %98 : i32
    %100 = tpu.assume_multiple %99, 128 : i32
    %c0_46 = arith.constant 0 : index
    %c0_47 = arith.constant 0 : index
    %101 = arith.index_cast %100 : i32 to index
    %102 = vector.load %arg6[%c0_46, %c0_47, %101] : memref<1x1x1408xf32, #tpu.memory_space<vmem>>, vector<1x1x256xf32>
    %103 = vector.shape_cast %102 : vector<1x1x256xf32> to vector<1x256xf32>
    %104 = vector.extract_strided_slice %13 {offsets = [7, 0], sizes = [1, 256], strides = [1, 1]} : vector<8x256xf32> to vector<1x256xf32>
    %105 = arith.addf %103, %104 : vector<1x256xf32>
    %c0_48 = arith.constant 0 : index
    %c0_49 = arith.constant 0 : index
    %106 = arith.index_cast %100 : i32 to index
    %107 = vector.load %arg6[%c0_48, %c0_49, %106] : memref<1x1x1408xf32, #tpu.memory_space<vmem>>, vector<1x1x256xf32>
    %108 = vector.shape_cast %107 : vector<1x1x256xf32> to vector<1x256xf32>
    %109 = vector.shape_cast %105 : vector<1x256xf32> to vector<1x1x256xf32>
    tpu.vector_store %arg6[%c0_48, %c0_49, %106], %109 {strides = array<i32>} : memref<1x1x1408xf32, #tpu.memory_space<vmem>>, vector<1x1x256xf32>,
    return
  }
  func.func @transform_0(%arg0: i32, %arg1: i32) -> (i32, i32, i32) {
    %c0_i32 = arith.constant 0 : i32
    %c0_i32_0 = arith.constant 0 : i32
    %c0_i32_1 = arith.constant 0 : i32
    return %arg0, %c0_i32, %c0_i32_0 : i32, i32, i32
  }
  func.func @transform_1(%arg0: i32, %arg1: i32) -> (i32, i32, i32) {
    %c0_i32 = arith.constant 0 : i32
    %c0_i32_0 = arith.constant 0 : i32
    %c0_i32_1 = arith.constant 0 : i32
    return %arg0, %c0_i32, %c0_i32_0 : i32, i32, i32
  }
  func.func @transform_2(%arg0: i32, %arg1: i32) -> (i32, i32, i32) {
    %c0_i32 = arith.constant 0 : i32
    %c0_i32_0 = arith.constant 0 : i32
    return %arg0, %c0_i32, %arg1 : i32, i32, i32
  }
  func.func @transform_3(%arg0: i32, %arg1: i32) -> (i32, i32, i32) {
    %c0_i32 = arith.constant 0 : i32
    %c0_i32_0 = arith.constant 0 : i32
    %c0_i32_1 = arith.constant 0 : i32
    return %arg0, %c0_i32, %c0_i32_0 : i32, i32, i32
  }
  func.func @transform_4(%arg0: i32, %arg1: i32) -> (i32, i32, i32) {
    %c0_i32 = arith.constant 0 : i32
    %c0_i32_0 = arith.constant 0 : i32
    %c0_i32_1 = arith.constant 0 : i32
    return %arg0, %c0_i32, %c0_i32_0 : i32, i32, i32
  }
}

</mosaic_0001>

<llo_original>
// kernel: tpu_custom_call.1
$region0: #{tpu_custom_call.1}
  #allocation0 [shape = 'u32[]', space=smem, size = 0x4, offset = 0x4, fixed_abs, tag = 'smem constant byte address 0x4 - core index']
  #allocation1 [shape = 'u32[72,128]{1,0:T(1,128)}', space=vmem, size = 0x9000, scoped, tag = 'internal scratch']
  %s0 = inlined_call_operand.vmem [shape: bf16[2,8,128], index: 0, kind: input, shape index: {}]
  %s1 = inlined_call_operand.vmem [shape: f32[2,8,1], index: 1, kind: input, shape index: {}]
  %s2 = inlined_call_operand.hbm [shape: bf16[2,128,512], index: 2, kind: input, shape index: {}]
  %s3 = inlined_call_operand.hbm [shape: f32[2,1,1408], index: 3, kind: input, shape index: {}]
  %s4 = inlined_call_operand.hbm [shape: f32[2,1,1408], index: 4, kind: output, shape index: {}]
  %s5 = sld [smem:[#allocation0]]
  $region61: #{tpu_custom_call.1} parent=0
    _
  %s7 = ssub.s32 1, %s5
  %s8 = scalar_select 0, %s7, %s5
  $region1: #{tpu_custom_call.1} parent=0
    #allocation2 [shape = 'u8[131072]{0}', space=vmem, size = 0x20000, scoped, tag = 'input window, operand 2']
    #allocation3 [shape = 's32[2]{0}', space=sflag, size = 0x8, scoped, tag = 'scoped memory for tpu_custom_call.1']
    #allocation4 [shape = 's32[2]{0}', space=sflag, size = 0x8, scoped, tag = 'scoped memory for tpu_custom_call.1']
    #allocation5 [shape = 'u8[11264]{0}', space=vmem, size = 0x2c00, scoped, tag = 'input window, operand 3']
    #allocation6 [shape = 's32[2]{0}', space=sflag, size = 0x8, scoped, tag = 'scoped memory for tpu_custom_call.1']
    #allocation7 [shape = 'u8[11264]{0}', space=vmem, size = 0x2c00, scoped, tag = 'output window, operand 0']
    %9 = vsyncpa [#allocation3], 0
    %s10 = scalar_lea.sflag [#allocation3], 1
    %11 = vsyncpa %s10, 0
    %12 = vsyncpa [#allocation6], 0
    %s13 = scalar_lea.sflag [#allocation6], 1
    %14 = vsyncpa %s13, 0
    %15 = vsyncpa [#allocation4], 0
    %s16 = scalar_lea.sflag [#allocation4], 1
    %17 = vsyncpa %s16, 0
    loop: start=0, step=1, limit=6
    $region2: #{tpu_custom_call.1} parent=1 // loop_pre_header
      _
    $region3: #{tpu_custom_call.1} parent=1 // loop_header
      %s19 = sphi 0, %s23
      %p20 = scmp.ge.s32.totalorder %s19, 6
      %s26 = sphi 0, %s38
      %s27 = sphi 0, %s34
      %s28 = sphi 0, %s26
      %s29 = sphi 0, %s27
      %s30 = sphi 0, %s28
      %s31 = sphi 0, %s29
      %s41 = sphi 0, %s43
      %s44 = sphi 0, %s41
      %s45 = sphi 0, %s44
      %s61 = sphi 0, %s45
      %s67 = sphi 0, %s69
      %s70 = sphi 0, %s67
      %s71 = sphi 0, %s70
      %s87 = sphi 0, %s71
      %s95 = sphi 0, %s97
      %s98 = sphi 0, %s95
      %s99 = sphi 0, %s98
      %s115 = sphi 0, %s99
      %s121 = sphi 0, %s123
      %s124 = sphi 0, %s121
      %s125 = sphi 0, %s124
      %s141 = sphi 0, %s125
      %s147 = sphi 0, %s149
      %s150 = sphi 0, %s147
      %s151 = sphi 0, %s150
      %s167 = sphi 0, %s151
    $region4: #{tpu_custom_call.1} parent=1 // loop_header_branch
      %22 = sbr.rel (%p20) target = $region8
    $region5: #{tpu_custom_call.1} parent=1 // loop_body
      %s24 = ssub.s32 %s19, 1
      %s25 = ssub.s32 %s19, 2
      %s32 = sadd.s32 1, %s27
      %p33 = scmp.ge.s32.totalorder %s32, 2
      %s34 = scalar_select %p33, 0, %s32
      %s35 = sadd.s32 1, %s26
      %s36 = scalar_select %p33, %s35, %s26
      %p37 = scmp.ge.s32.totalorder %s36, 2
      %s38 = scalar_select %p37, 0, %s36
      %s39 = ssub.s32 %s26, %s38
      %p40 = scmp.eq.s32.totalorder %s39, 0
      %s42 = sadd.s32 %s41, 1
      %s43 = scalar_select %p40, %s41, %s42
      %p46 = pneg %p40
      %p47 = scmp.eq.s32.totalorder %s19, 3
      %p48 = por %p46, %p47
      %p49 = scmp.ne.s32.totalorder %s41, %s44
      %p50 = scmp.eq.s32.totalorder %s19, 0
      %p51 = por %p49, %p50
      %p52 = scmp.ne.s32.totalorder %s41, %s44
      %p53 = scmp.eq.s32.totalorder %s24, 3
      %p54 = por %p52, %p53
      %p55 = scmp.ne.s32.totalorder %s44, %s45
      %p56 = scmp.eq.s32.totalorder %s24, 0
      %p57 = por %p55, %p56
      %p58 = scmp.ne.s32.totalorder %s44, %s45
      %p59 = scmp.eq.s32.totalorder %s25, 3
      %p60 = por %p58, %p59
      %p62 = scmp.ne.s32.totalorder %s45, %s61
      %p63 = scmp.eq.s32.totalorder %s25, 0
      %p64 = por %p62, %p63
      %s65 = ssub.s32 %s26, %s38
      %p66 = scmp.eq.s32.totalorder %s65, 0
      %s68 = sadd.s32 %s67, 1
      %s69 = scalar_select %p66, %s67, %s68
      %p72 = pneg %p66
      %p73 = scmp.eq.s32.totalorder %s19, 3
      %p74 = por %p72, %p73
      %p75 = scmp.ne.s32.totalorder %s67, %s70
      %p76 = scmp.eq.s32.totalorder %s19, 0
      %p77 = por %p75, %p76
      %p78 = scmp.ne.s32.totalorder %s67, %s70
      %p79 = scmp.eq.s32.totalorder %s24, 3
      %p80 = por %p78, %p79
      %p81 = scmp.ne.s32.totalorder %s70, %s71
      %p82 = scmp.eq.s32.totalorder %s24, 0
      %p83 = por %p81, %p82
      %p84 = scmp.ne.s32.totalorder %s70, %s71
      %p85 = scmp.eq.s32.totalorder %s25, 3
      %p86 = por %p84, %p85
      %p88 = scmp.ne.s32.totalorder %s71, %s87
      %p89 = scmp.eq.s32.totalorder %s25, 0
      %p90 = por %p88, %p89
      %s91 = ssub.s32 %s26, %s38
      %s92 = ssub.s32 %s27, %s34
      %s93 = sor.u32 %s91, %s92
      %p94 = scmp.eq.s32.totalorder %s93, 0
      %s96 = sadd.s32 %s95, 1
      %s97 = scalar_select %p94, %s95, %s96
      %p100 = pneg %p94
      %p101 = scmp.eq.s32.totalorder %s19, 3
      %p102 = por %p100, %p101
      %p103 = scmp.ne.s32.totalorder %s95, %s98
      %p104 = scmp.eq.s32.totalorder %s19, 0
      %p105 = por %p103, %p104
      %p106 = scmp.ne.s32.totalorder %s95, %s98
      %p107 = scmp.eq.s32.totalorder %s24, 3
      %p108 = por %p106, %p107
      %p109 = scmp.ne.s32.totalorder %s98, %s99
      %p110 = scmp.eq.s32.totalorder %s24, 0
      %p111 = por %p109, %p110
      %p112 = scmp.ne.s32.totalorder %s98, %s99
      %p113 = scmp.eq.s32.totalorder %s25, 3
      %p114 = por %p112, %p113
      %p116 = scmp.ne.s32.totalorder %s99, %s115
      %p117 = scmp.eq.s32.totalorder %s25, 0
      %p118 = por %p116, %p117
      %s119 = ssub.s32 %s26, %s38
      %p120 = scmp.eq.s32.totalorder %s119, 0
      %s122 = sadd.s32 %s121, 1
      %s123 = scalar_select %p120, %s121, %s122
      %p126 = pneg %p120
      %p127 = scmp.eq.s32.totalorder %s19, 3
      %p128 = por %p126, %p127
      %p129 = scmp.ne.s32.totalorder %s121, %s124
      %p130 = scmp.eq.s32.totalorder %s19, 0
      %p131 = por %p129, %p130
      %p132 = scmp.ne.s32.totalorder %s121, %s124
      %p133 = scmp.eq.s32.totalorder %s24, 3
      %p134 = por %p132, %p133
      %p135 = scmp.ne.s32.totalorder %s124, %s125
      %p136 = scmp.eq.s32.totalorder %s24, 0
      %p137 = por %p135, %p136
      %p138 = scmp.ne.s32.totalorder %s124, %s125
      %p139 = scmp.eq.s32.totalorder %s25, 3
      %p140 = por %p138, %p139
      %p142 = scmp.ne.s32.totalorder %s125, %s141
      %p143 = scmp.eq.s32.totalorder %s25, 0
      %p144 = por %p142, %p143
      %s145 = ssub.s32 %s26, %s38
      %p146 = scmp.eq.s32.totalorder %s145, 0
      %s148 = sadd.s32 %s147, 1
      %s149 = scalar_select %p146, %s147, %s148
      %p152 = pneg %p146
      %p153 = scmp.eq.s32.totalorder %s19, 3
      %p154 = por %p152, %p153
      %p155 = scmp.ne.s32.totalorder %s147, %s150
      %p156 = scmp.eq.s32.totalorder %s19, 0
      %p157 = por %p155, %p156
      %p158 = scmp.ne.s32.totalorder %s147, %s150
      %p159 = scmp.eq.s32.totalorder %s24, 3
      %p160 = por %p158, %p159
      %p161 = scmp.ne.s32.totalorder %s150, %s151
      %p162 = scmp.eq.s32.totalorder %s24, 0
      %p163 = por %p161, %p162
      %p164 = scmp.ne.s32.totalorder %s150, %s151
      %p165 = scmp.eq.s32.totalorder %s25, 3
      %p166 = por %p164, %p165
      %p168 = scmp.ne.s32.totalorder %s151, %s167
      %p169 = scmp.eq.s32.totalorder %s25, 0
      %p170 = por %p168, %p169
      %p171 = scmp.le.s32.totalorder 1, %s19
      %p172 = scmp.lt.s32.totalorder %s19, 5
      %p173 = pnand %p171, %p172
      %p174 = pneg %p173
      // Predicated region
      $region9: #{tpu_custom_call.1} parent=5 // pred_check
        _
      $region10: #{tpu_custom_call.1} parent=5 // pred_check_branch
        %176 = sbr.rel (%p173) target = $region12
      $region11: #{tpu_custom_call.1} parent=5 // pred_region
        %s177 = ssub.s32 %s19, 1
      $region12: #{tpu_custom_call.1} parent=5 // pred_fallthru
        _
      %p178 = scmp.lt.s32.totalorder %s19, 4
      // Predicated region
      $region13: #{tpu_custom_call.1} parent=5 // pred_check
        %p179 = pneg %p178
      $region14: #{tpu_custom_call.1} parent=5 // pred_check_branch
        %181 = sbr.rel (%p179) target = $region16
      $region15: #{tpu_custom_call.1} parent=5 // pred_region
        // Predicated region
        $region17: #{tpu_custom_call.1} parent=15 // pred_check
          %p182 = pneg %p51
        $region18: #{tpu_custom_call.1} parent=15 // pred_check_branch
          %184 = sbr.rel (%p182) target = $region20
        $region19: #{tpu_custom_call.1} parent=15 // pred_region
          %p185 = scmp.lt.s32.totalorder %s26, 1
          %s186 = scalar_select %p185, %s26, 1
          %s187 = smul.addr %s186, 4
          %s188 = scalar_lea.vmem %s0, %s187
        $region20: #{tpu_custom_call.1} parent=15 // pred_fallthru
          _
        // Predicated region
        $region21: #{tpu_custom_call.1} parent=15 // pred_check
          %p189 = pneg %p77
        $region22: #{tpu_custom_call.1} parent=15 // pred_check_branch
          %191 = sbr.rel (%p189) target = $region24
        $region23: #{tpu_custom_call.1} parent=15 // pred_region
          %p192 = scmp.lt.s32.totalorder %s26, 1
          %s193 = scalar_select %p192, %s26, 1
          %s194 = smul.addr %s193, 8
          %s195 = scalar_lea.vmem %s1, %s194
        $region24: #{tpu_custom_call.1} parent=15 // pred_fallthru
          _
        // Predicated region
        $region25: #{tpu_custom_call.1} parent=15 // pred_check
          %p196 = pneg %p105
        $region26: #{tpu_custom_call.1} parent=15 // pred_check_branch
          %198 = sbr.rel (%p196) target = $region28
        $region27: #{tpu_custom_call.1} parent=15 // pred_region
          %s199 = sand.u32 %s95, 1
          %s200 = scalar_lea.sflag [#allocation3], %s199
          %s201 = sand.u32 %s95, 1
          %s202 = smul.addr %s201, 128
          %s203 = scalar_lea.vmem [#allocation2], %s202
          %s204 = smul.u32 2, %s27
          %206 = vsyncadd %s200, 0
          %s207 = smul.addr %s26, 64
          %s208 = sadd.s32 %s204, %s207
          %s209 = smul.addr %s208, 4
          %s210 = scalar_lea.hbm %s2, %s209
          %s211 = sshll.u32 %s210, 4
          %s212 = int_to_ptr.hbm [resolvable:$true] %s211
          %s213 = sshll.u32 %s203, 4
          %s214 = int_to_ptr.vmem [resolvable:$true] %s213
          %219 = dma.hbm_to_vmem [thread:$0]  %s212, 2048, %s214, %s200, 256, 128, 8
        $region28: #{tpu_custom_call.1} parent=15 // pred_fallthru
          _
        // Predicated region
        $region29: #{tpu_custom_call.1} parent=15 // pred_check
          %p220 = pneg %p131
        $region30: #{tpu_custom_call.1} parent=15 // pred_check_branch
          %222 = sbr.rel (%p220) target = $region32
        $region31: #{tpu_custom_call.1} parent=15 // pred_region
          %s223 = sand.u32 %s121, 1
          %s224 = scalar_lea.sflag [#allocation6], %s223
          %s225 = sand.u32 %s121, 1
          %s226 = smul.addr %s225, 11
          %s227 = scalar_lea.vmem [#allocation5], %s226
          %229 = vsyncadd %s224, 0
          %s230 = smul.addr %s26, 11
          %s231 = scalar_lea.hbm %s3, %s230
          %s233 = sshll.u32 %s231, 4
          %s234 = int_to_ptr.hbm [resolvable:$true] %s233
          %s235 = sshll.u32 %s227, 4
          %s236 = int_to_ptr.vmem [resolvable:$true] %s235
          %238 = dma.hbm_to_vmem [thread:$0]  %s234, 176, %s236, %s224
        $region32: #{tpu_custom_call.1} parent=15 // pred_fallthru
          _
      $region16: #{tpu_custom_call.1} parent=5 // pred_fallthru
        _
      %p239 = scmp.le.s32.totalorder 1, %s19
      %p240 = scmp.lt.s32.totalorder %s19, 5
      %p241 = pnand %p239, %p240
      %p242 = pneg %p241
      // Predicated region
      $region33: #{tpu_custom_call.1} parent=5 // pred_check
        _
      $region34: #{tpu_custom_call.1} parent=5 // pred_check_branch
        %244 = sbr.rel (%p241) target = $region36
      $region35: #{tpu_custom_call.1} parent=5 // pred_region
        %s245 = ssub.s32 %s19, 1
        %s246 = sand.u32 %s98, 1
        %s247 = scalar_lea.sflag [#allocation3], %s246
        %s248 = sand.u32 %s98, 1
        %s249 = smul.addr %s248, 128
        %s250 = scalar_lea.vmem [#allocation2], %s249
        // Predicated region
        $region37: #{tpu_custom_call.1} parent=35 // pred_check
          %p251 = pneg %p111
        $region38: #{tpu_custom_call.1} parent=35 // pred_check_branch
          %253 = sbr.rel (%p251) target = $region40
        $region39: #{tpu_custom_call.1} parent=35 // pred_region
          %255 = dma.done %s247, 2048
        $region40: #{tpu_custom_call.1} parent=35 // pred_fallthru
          _
        %s256 = sand.u32 %s124, 1
        %s257 = scalar_lea.sflag [#allocation6], %s256
        %s258 = sand.u32 %s124, 1
        %s259 = smul.addr %s258, 11
        %s260 = scalar_lea.vmem [#allocation5], %s259
        // Predicated region
        $region41: #{tpu_custom_call.1} parent=35 // pred_check
          %p261 = pneg %p137
        $region42: #{tpu_custom_call.1} parent=35 // pred_check_branch
          %263 = sbr.rel (%p261) target = $region44
        $region43: #{tpu_custom_call.1} parent=35 // pred_region
          %265 = dma.done %s257, 176
        $region44: #{tpu_custom_call.1} parent=35 // pred_fallthru
          _
        %p266 = scmp.lt.s32.totalorder %s28, 1
        %s267 = scalar_select %p266, %s28, 1
        %s268 = smul.addr %s267, 4
        %s269 = scalar_lea.vmem %s0, %s268
        %p270 = pneg %p57
        %p271 = pneg %p54
        %p272 = scmp.lt.s32.totalorder %s28, 1
        %s273 = scalar_select %p272, %s28, 1
        %s274 = smul.addr %s273, 8
        %s275 = scalar_lea.vmem %s1, %s274
        %p276 = pneg %p83
        %p277 = pneg %p80
        %s278 = sand.u32 %s98, 1
        %s279 = scalar_lea.sflag [#allocation3], %s278
        %s280 = sand.u32 %s98, 1
        %s281 = smul.addr %s280, 128
        %s282 = scalar_lea.vmem [#allocation2], %s281
        %p283 = pneg %p111
        %p284 = pneg %p108
        %s285 = sand.u32 %s124, 1
        %s286 = scalar_lea.sflag [#allocation6], %s285
        %s287 = sand.u32 %s124, 1
        %s288 = smul.addr %s287, 11
        %s289 = scalar_lea.vmem [#allocation5], %s288
        %p290 = pneg %p137
        %p291 = pneg %p134
        %p292 = pneg %p163
        %p293 = pneg %p160
        %s294 = sand.u32 %s150, 1
        %s295 = scalar_lea.sflag [#allocation4], %s294
        %s296 = sand.u32 %s150, 1
        %s297 = smul.addr %s296, 11
        %s298 = scalar_lea.vmem [#allocation7], %s297
        %p299 = scmp.lt.s32.totalorder %s28, 1
        %s300 = scalar_select %p299, %s28, 1
        %s301 = smul.addr %s300, 4
        %s302 = scalar_lea.vmem %s0, %s301
        %p303 = scmp.lt.s32.totalorder %s28, 1
        %s304 = scalar_select %p303, %s28, 1
        %s305 = smul.addr %s304, 8
        %s306 = scalar_lea.vmem %s1, %s305
        %s307 = smul.u32 2, %s29
        %p308 = scmp.eq.s32.totalorder %s29, 0
        // Predicated region
        $region45: #{tpu_custom_call.1} parent=35 // pred_check
          %p309 = pneg %p308
        $region46: #{tpu_custom_call.1} parent=35 // pred_check_branch
          %311 = sbr.rel (%p309) target = $region48
        $region47: #{tpu_custom_call.1} parent=35 // pred_region
          %v312 = vld [vmem:[%s260] sm:$0xff]
          %v313 = vld [vmem:[%s260 + $0x8] sm:$0x7]
          %314 = vst [vmem:[%s298] sm:$0xff] %v312
          %v315 = vlaneseq
          %vm316 = vcmp.ge.s32.totalorder %v315, 0
          %vm317 = vcmp.lt.s32.totalorder %v315, 384
          %vm318 = vmand %vm316, %vm317
          %319 = vst.msk [vmem:[%s298 + $0x8] sm:$0x7] %vm318, %v313
        $region48: #{tpu_custom_call.1} parent=35 // pred_fallthru
          _
        %v320 = vld [vmem:[%s302] sm:$0xf]
        %v321 = vld [vmem:[%s306] sm:$0xff]
        %v322 = vunpack.c.l.bf16 %v320
        %324 = vset.pattern.permute.xlu0 0
        %325 = vperm.xlu0 %324, %v321
        %v326 = vpop.permute.xlu0 %325
        %v328 = vmul.f32 %v322, %v326
        %v329 = vpack.c.bf16 %v328, %v328
        %v330 = vld [vmem:[%s250] sm:$0xff]
        %v331 = vld [vmem:[%s250 + $0x8] sm:$0xff]
        %v332 = vld [vmem:[%s250 + $0x10] sm:$0xff]
        %v333 = vld [vmem:[%s250 + $0x18] sm:$0xff]
        %v334 = vld [vmem:[%s250 + $0x20] sm:$0xff]
        %v335 = vld [vmem:[%s250 + $0x28] sm:$0xff]
        %v336 = vld [vmem:[%s250 + $0x30] sm:$0xff]
        %v337 = vld [vmem:[%s250 + $0x38] sm:$0xff]
        %v338 = vld [vmem:[%s250 + $0x40] sm:$0xff]
        %v339 = vld [vmem:[%s250 + $0x48] sm:$0xff]
        %v340 = vld [vmem:[%s250 + $0x50] sm:$0xff]
        %v341 = vld [vmem:[%s250 + $0x58] sm:$0xff]
        %v342 = vld [vmem:[%s250 + $0x60] sm:$0xff]
        %v343 = vld [vmem:[%s250 + $0x68] sm:$0xff]
        %v344 = vld [vmem:[%s250 + $0x70] sm:$0xff]
        %v345 = vld [vmem:[%s250 + $0x78] sm:$0xff]
        %v362 = vunpack.c.l.b16 %v330
        %v363 = vunpack.c.h.b16 %v330
        %v364 = vunpack.c.l.b16 %v331
        %v365 = vunpack.c.h.b16 %v331
        %v366 = vunpack.c.l.b16 %v332
        %v367 = vunpack.c.h.b16 %v332
        %v368 = vunpack.c.l.b16 %v333
        %v369 = vunpack.c.h.b16 %v333
        %v370 = vunpack.c.l.b16 %v334
        %v371 = vunpack.c.h.b16 %v334
        %v372 = vunpack.c.l.b16 %v335
        %v373 = vunpack.c.h.b16 %v335
        %v374 = vunpack.c.l.b16 %v336
        %v375 = vunpack.c.h.b16 %v336
        %v376 = vunpack.c.l.b16 %v337
        %v377 = vunpack.c.h.b16 %v337
        %v378 = vunpack.c.l.b16 %v338
        %v379 = vunpack.c.h.b16 %v338
        %v380 = vunpack.c.l.b16 %v339
        %v381 = vunpack.c.h.b16 %v339
        %v382 = vunpack.c.l.b16 %v340
        %v383 = vunpack.c.h.b16 %v340
        %v384 = vunpack.c.l.b16 %v341
        %v385 = vunpack.c.h.b16 %v341
        %v386 = vunpack.c.l.b16 %v342
        %v387 = vunpack.c.h.b16 %v342
        %v388 = vunpack.c.l.b16 %v343
        %v389 = vunpack.c.h.b16 %v343
        %v390 = vunpack.c.l.b16 %v344
        %v391 = vunpack.c.h.b16 %v344
        %v392 = vunpack.c.l.b16 %v345
        %v393 = vunpack.c.h.b16 %v345
        %v394 = vpack.c.b16 %v364, %v362
        %v395 = vpack.c.b16 %v365, %v363
        %v396 = vpack.c.b16 %v368, %v366
        %v397 = vpack.c.b16 %v369, %v367
        %v398 = vpack.c.b16 %v372, %v370
        %v399 = vpack.c.b16 %v373, %v371
        %v400 = vpack.c.b16 %v376, %v374
        %v401 = vpack.c.b16 %v377, %v375
        %v402 = vpack.c.b16 %v380, %v378
        %v403 = vpack.c.b16 %v381, %v379
        %v404 = vpack.c.b16 %v384, %v382
        %v405 = vpack.c.b16 %v385, %v383
        %v406 = vpack.c.b16 %v388, %v386
        %v407 = vpack.c.b16 %v389, %v387
        %v408 = vpack.c.b16 %v392, %v390
        %v409 = vpack.c.b16 %v393, %v391
        %426 = vmatpush.bf16.msra.mxu0 %v408
        %427 = vmatpush.bf16.msra.mxu0 %v406
        %428 = vmatpush.bf16.msra.mxu0 %v404
        %429 = vmatpush.bf16.msra.mxu0 %v402
        %430 = vmatpush.bf16.msra.mxu0 %v400
        %431 = vmatpush.bf16.msra.mxu0 %v398
        %432 = vmatpush.bf16.msra.mxu0 %v396
        %433 = vmatpush.bf16.msra.mxu0 %v394
        %434 = vmatmul.bf16.gmra.mxu0 %v329
        %v435 = vpop.f32.mrf.mxu0
        %v436 = vadd.f32 0.0, %v435
        %v437 = vpop.f32.mrf.mxu0
        %438 = vdwg.mxu0
        %439 = vmatpush.bf16.msra.mxu0 %v409
        %440 = vmatpush.bf16.msra.mxu0 %v407
        %441 = vmatpush.bf16.msra.mxu0 %v405
        %442 = vmatpush.bf16.msra.mxu0 %v403
        %443 = vmatpush.bf16.msra.mxu0 %v401
        %444 = vmatpush.bf16.msra.mxu0 %v399
        %445 = vmatpush.bf16.msra.mxu0 %v397
        %446 = vmatpush.bf16.msra.mxu0 %v395
        %447 = vmatmul.bf16.gmra.mxu0 %v329
        %v448 = vpop.f32.mrf.mxu0
        %v449 = vadd.f32 0.0, %v448
        %v450 = vpop.f32.mrf.mxu0
        %451 = vdwg.mxu0
        %s452 = smul.u32 %s29, 256
        %s453 = sshra.s32 %s452, 7
        %s454 = sand.u32 %s452, 127
        %s455 = scalar_lea.vmem %s298, %s453 [#allocation7]
        %v456 = vld [vmem:[%s455] sm:$0x3]
        %v459 = vrot.slane %v449, 7
        %vm460 = vcmask 1040384
        %v461 = vsel %vm460, %v436, %v459
        %v463 = vadd.f32 %v456, %v461
        %v464 = vlaneseq
        %vm465 = vcmp.ge.s32.totalorder %v464, 0
        %vm466 = vcmp.lt.s32.totalorder %v464, 256
        %vm467 = vmand %vm465, %vm466
        %468 = vst.msk [vmem:[%s455] sm:$0x3] %vm467, %v463
        %s469 = sadd.s32 %s452, 128
        %s470 = sshra.s32 %s469, 7
        %s471 = sand.u32 %s469, 127
        %s472 = scalar_lea.vmem %s298, %s470 [#allocation7]
        %v473 = vld [vmem:[%s472] sm:$0x3]
        %474 = vst [vmem:[#allocation1] sm:$0xff] %v436
        %475 = vst [vmem:[#allocation1 + $0x9] sm:$0xff] %v449
        %s476 = scalar_lea.vmem [#allocation1], 1
        %v477 = vld [vmem:[%s476] ss:$9 sm:$0xff]
        %v479 = vadd.f32 %v473, %v477
        %480 = vst.msk [vmem:[%s472] sm:$0x3] %vm467, %v479
        %s481 = sadd.s32 %s452, 256
        %s482 = sshra.s32 %s481, 7
        %s483 = sand.u32 %s481, 127
        %s484 = scalar_lea.vmem %s298, %s482 [#allocation7]
        %v485 = vld [vmem:[%s484] sm:$0x3]
        %486 = vst [vmem:[#allocation1] sm:$0xff] %v436
        %487 = vst [vmem:[#allocation1 + $0x9] sm:$0xff] %v449
        %s488 = scalar_lea.vmem [#allocation1], 2
        %v489 = vld [vmem:[%s488] ss:$9 sm:$0xff]
        %v491 = vadd.f32 %v485, %v489
        %492 = vst.msk [vmem:[%s484] sm:$0x3] %vm467, %v491
        %s493 = sadd.s32 %s452, 384
        %s494 = sshra.s32 %s493, 7
        %s495 = sand.u32 %s493, 127
        %s496 = scalar_lea.vmem %s298, %s494 [#allocation7]
        %v497 = vld [vmem:[%s496] sm:$0x3]
        %498 = vst [vmem:[#allocation1] sm:$0xff] %v436
        %499 = vst [vmem:[#allocation1 + $0x9] sm:$0xff] %v449
        %s500 = scalar_lea.vmem [#allocation1], 3
        %v501 = vld [vmem:[%s500] ss:$9 sm:$0xff]
        %v503 = vadd.f32 %v497, %v501
        %504 = vst.msk [vmem:[%s496] sm:$0x3] %vm467, %v503
        %s505 = sadd.s32 %s452, 512
        %s506 = sshra.s32 %s505, 7
        %s507 = sand.u32 %s505, 127
        %s508 = scalar_lea.vmem %s298, %s506 [#allocation7]
        %v509 = vld [vmem:[%s508] sm:$0x3]
        %510 = vst [vmem:[#allocation1] sm:$0xff] %v436
        %511 = vst [vmem:[#allocation1 + $0x9] sm:$0xff] %v449
        %s512 = scalar_lea.vmem [#allocation1], 4
        %v513 = vld [vmem:[%s512] ss:$9 sm:$0xff]
        %v515 = vadd.f32 %v509, %v513
        %516 = vst.msk [vmem:[%s508] sm:$0x3] %vm467, %v515
        %s517 = sadd.s32 %s452, 640
        %s518 = sshra.s32 %s517, 7
        %s519 = sand.u32 %s517, 127
        %s520 = scalar_lea.vmem %s298, %s518 [#allocation7]
        %v521 = vld [vmem:[%s520] sm:$0x3]
        %522 = vst [vmem:[#allocation1] sm:$0xff] %v436
        %523 = vst [vmem:[#allocation1 + $0x9] sm:$0xff] %v449
        %s524 = scalar_lea.vmem [#allocation1], 5
        %v525 = vld [vmem:[%s524] ss:$9 sm:$0xff]
        %v527 = vadd.f32 %v521, %v525
        %528 = vst.msk [vmem:[%s520] sm:$0x3] %vm467, %v527
        %s529 = sadd.s32 %s452, 768
        %s530 = sshra.s32 %s529, 7
        %s531 = sand.u32 %s529, 127
        %s532 = scalar_lea.vmem %s298, %s530 [#allocation7]
        %v533 = vld [vmem:[%s532] sm:$0x3]
        %534 = vst [vmem:[#allocation1] sm:$0xff] %v436
        %535 = vst [vmem:[#allocation1 + $0x9] sm:$0xff] %v449
        %s536 = scalar_lea.vmem [#allocation1], 6
        %v537 = vld [vmem:[%s536] ss:$9 sm:$0xff]
        %v539 = vadd.f32 %v533, %v537
        %540 = vst.msk [vmem:[%s532] sm:$0x3] %vm467, %v539
        %s541 = sadd.s32 %s452, 896
        %s542 = sshra.s32 %s541, 7
        %s543 = sand.u32 %s541, 127
        %s544 = scalar_lea.vmem %s298, %s542 [#allocation7]
        %v545 = vld [vmem:[%s544] sm:$0x3]
        %546 = vst [vmem:[#allocation1] sm:$0xff] %v436
        %547 = vst [vmem:[#allocation1 + $0x9] sm:$0xff] %v449
        %s548 = scalar_lea.vmem [#allocation1], 7
        %v549 = vld [vmem:[%s548] ss:$9 sm:$0xff]
        %v551 = vadd.f32 %v545, %v549
        %552 = vst.msk [vmem:[%s544] sm:$0x3] %vm467, %v551
        %s553 = sand.u32 %s150, 1
        %s554 = scalar_lea.sflag [#allocation4], %s553
        %s555 = sand.u32 %s150, 1
        %s556 = smul.addr %s555, 11
        %s557 = scalar_lea.vmem [#allocation7], %s556
        // Predicated region
        $region49: #{tpu_custom_call.1} parent=35 // pred_check
          %p558 = pneg %p160
        $region50: #{tpu_custom_call.1} parent=35 // pred_check_branch
          %560 = sbr.rel (%p558) target = $region52
        $region51: #{tpu_custom_call.1} parent=35 // pred_region
          %562 = vsyncadd %s554, 0
          %s563 = smul.addr %s28, 11
          %s564 = scalar_lea.hbm %s4, %s563
          %s566 = sshll.u32 %s557, 4
          %s567 = int_to_ptr.vmem [resolvable:$true] %s566
          %s568 = sshll.u32 %s564, 4
          %s569 = int_to_ptr.hbm [resolvable:$true] %s568
          %571 = dma.vmem_to_hbm [thread:$0]  %s567, 176, %s569, %s554
        $region52: #{tpu_custom_call.1} parent=35 // pred_fallthru
          _
      $region36: #{tpu_custom_call.1} parent=5 // pred_fallthru
        _
      %p572 = scmp.le.s32.totalorder 2, %s19
      // Predicated region
      $region53: #{tpu_custom_call.1} parent=5 // pred_check
        %p573 = pneg %p572
      $region54: #{tpu_custom_call.1} parent=5 // pred_check_branch
        %575 = sbr.rel (%p573) target = $region56
      $region55: #{tpu_custom_call.1} parent=5 // pred_region
        %s576 = ssub.s32 %s19, 2
        // Predicated region
        $region57: #{tpu_custom_call.1} parent=55 // pred_check
          %p577 = pneg %p166
        $region58: #{tpu_custom_call.1} parent=55 // pred_check_branch
          %579 = sbr.rel (%p577) target = $region60
        $region59: #{tpu_custom_call.1} parent=55 // pred_region
          %s580 = sand.u32 %s151, 1
          %s581 = scalar_lea.sflag [#allocation4], %s580
          %s582 = sand.u32 %s151, 1
          %s583 = smul.addr %s582, 11
          %s584 = scalar_lea.vmem [#allocation7], %s583
          %586 = dma.done %s581, 176
        $region60: #{tpu_custom_call.1} parent=55 // pred_fallthru
          _
      $region56: #{tpu_custom_call.1} parent=5 // pred_fallthru
        _
    $region6: #{tpu_custom_call.1} parent=1 // loop_footer
      %s23 = sadd.s32 1, %s19
    $region7: #{tpu_custom_call.1} parent=1 // loop_footer_branch
      %18 = sbr.rel target = $region3
    $region8: #{tpu_custom_call.1} parent=1 // loop_exit
      _
    %587 = vsyncpa [#allocation3], 1
    %s588 = scalar_lea.sflag [#allocation3], 1
    %589 = vsyncpa %s588, 1
    %590 = vsyncpa [#allocation6], 1
    %s591 = scalar_lea.sflag [#allocation6], 1
    %592 = vsyncpa %s591, 1
    %593 = vsyncpa [#allocation4], 1
    %s594 = scalar_lea.sflag [#allocation4], 1
    %595 = vsyncpa %s594, 1

</llo_original>
